<compile_context>
chip_gen: v7x
topology: tpu7x:2x2x1
jax: 0.10.0
libtpu: 0.0.40
codegen_flags: <defaults>
</compile_context>

<pallas_src>
import functools

import numpy as np
import jax
import jax.numpy as jnp
from jax.experimental import pallas as pl
from jax.experimental.pallas import tpu as pltpu


def _round_up(x, m):
    return (x + m - 1) // m * m


def _make_pe_table(num_pos, d_model):
    """Positional encodings [num_pos, d_model] f32, built host-side in f64
    (as the PyTorch module does) with the sin-on-even / cos-on-odd
    *sequence-position* quirk."""
    pos = np.arange(num_pos, dtype=np.float64)[:, None]
    hid = np.arange(d_model)[None, :]
    angle = pos / np.power(10000.0, 2 * (hid // 2) / d_model)
    pe = angle.copy()
    pe[0::2, :] = np.sin(angle[0::2, :])   # even sequence positions
    pe[1::2, :] = np.cos(angle[1::2, :])   # odd sequence positions
    return jnp.asarray(pe, dtype=jnp.float32)


# ---------------------------------------------------------------------------
# Fast path: embedding table resident in VMEM, block of `block_seq` tokens per
# grid step.  PE already precomputed; inner loop = gather row + VPU add.
# ---------------------------------------------------------------------------
def _embed_resident_kernel(ids_ref, emb_ref, pe_ref, out_ref, *,
                           seq_pad, block_seq):
    """ids_ref : SMEM [B * seq_pad] int32 (scalar prefetch)
       emb_ref : VMEM [V, D]                (resident table, DMA'd once)
       pe_ref  : VMEM [block_seq, D]        (PE tile for this sequence block)
       out_ref : VMEM [1, block_seq, D]
    """
    b = pl.program_id(0)
    sb = pl.program_id(1)
    base = b * seq_pad + sb * block_seq

    # Static (fully unrolled) gather: one dynamic-sublane (1, D) read from the
    # resident table + one add per token.  The (block_seq, D) output block is
    # written back to HBM as a single dense DMA by the pipeline.
    for t in range(block_seq):
        tok = ids_ref[base + t]
        out_ref[0, pl.ds(t, 1), :] = (
            emb_ref[pl.ds(tok, 1), :] + pe_ref[pl.ds(t, 1), :])


# ---------------------------------------------------------------------------
# Fallback (table too large for VMEM): table stays in HBM; per-block manual
# DMA row gather (all DMAs in flight before the first wait), then one dense
# PE add + dense output store.
# ---------------------------------------------------------------------------
def _embed_dma_gather_kernel(ids_ref, emb_hbm, pe_ref, out_ref, buf, sems, *,
                             seq_pad, block_seq):
    """ids_ref : SMEM [B * seq_pad] int32 (scalar prefetch)
       emb_hbm : HBM  [V, D]               (memory_space=pl.ANY)
       pe_ref  : VMEM [block_seq, D]
       out_ref : VMEM [1, block_seq, D]
       buf     : VMEM [block_seq, D] scratch (gather destination)
       sems    : DMA semaphores [block_seq]
    """
    b = pl.program_id(0)
    sb = pl.program_id(1)
    base = b * seq_pad + sb * block_seq

    # Issue every row DMA first so their latencies overlap.
    for t in range(block_seq):
        tok = ids_ref[base + t]
        pltpu.make_async_copy(emb_hbm.at[pl.ds(tok, 1), :],
                              buf.at[pl.ds(t, 1), :],
                              sems.at[t]).start()
    # Wait on all of them (src index irrelevant for wait; sizes must match).
    for t in range(block_seq):
        pltpu.make_async_copy(emb_hbm.at[pl.ds(0, 1), :],
                              buf.at[pl.ds(t, 1), :],
                              sems.at[t]).wait()

    # Dense, full-vreg VPU add + single dense output store.
    out_ref[0, :, :] = buf[...] + pe_ref[...]


def embedding_forward(token_ids, emb_table, *, block_seq=128,
                      force_gather=False):
    """token_ids: [B, S] int, emb_table: [V, D] f32 -> [B, S, D] f32."""
    B, S = token_ids.shape
    V, D = emb_table.shape
    emb_table = emb_table.astype(jnp.float32)

    # Clamp untrusted ids: an id >= V (or < 0) would otherwise drive an
    # out-of-bounds gather (there is no runtime bounds check on TPU).
    ids = jnp.clip(token_ids.astype(jnp.int32), 0, V - 1)

    try:
        vmem_cap = pltpu.get_tpu_info().vmem_capacity_bytes
    except Exception:
        vmem_cap = 64 * 1024 * 1024   # conservative: v7x physical VMEM / core

    def _tiling(max_block):
        # Sequence tiling: sublane-aligned (multiple of 8) token blocks.
        s_pad = _round_up(S, 8)
        ts = min(max_block, s_pad)
        s_pad = _round_up(s_pad, ts)
        return s_pad, ts

    table_bytes = V * D * 4
    s_pad, ts = _tiling(block_seq)
    block_bytes = ts * D * 4
    # table (x2 buffers) + pe block (x2) + out block (x2) + slack
    vmem_needed = 2 * table_bytes + 4 * block_bytes + (2 << 20)
    use_resident = (not force_gather) and vmem_needed <= (3 * vmem_cap) // 4

    if not use_resident:
        # Smaller blocks for the gather path: bounds unroll length and the
        # number of in-flight row DMAs per step.
        s_pad, ts = _tiling(min(block_seq, 64))

    if s_pad != S:
        ids = jnp.pad(ids, ((0, 0), (0, s_pad - S)))  # pad with id 0
    ids_flat = ids.reshape(-1)
    pe = _make_pe_table(s_pad, D)

    if use_resident:
        grid_spec = pltpu.PrefetchScalarGridSpec(
            num_scalar_prefetch=1,
            grid=(B, s_pad // ts),
            in_specs=[
                # Whole table, constant block index -> DMA'd once, stays
                # resident in VMEM across the entire grid.
                pl.BlockSpec((V, D), lambda b, s, ids: (0, 0)),
                # Positional-encoding tile for this sequence block.
                pl.BlockSpec((ts, D), lambda b, s, ids: (s, 0)),
            ],
            out_specs=pl.BlockSpec((1, ts, D), lambda b, s, ids: (b, s, 0)),
        )
        out = pl.pallas_call(
            functools.partial(_embed_resident_kernel,
                              seq_pad=s_pad, block_seq=ts),
            out_shape=jax.ShapeDtypeStruct((B, s_pad, D), jnp.float32),
            grid_spec=grid_spec,
            compiler_params=pltpu.CompilerParams(
                dimension_semantics=("parallel", "parallel"),
                vmem_limit_bytes=int(min(0.9 * vmem_cap,
                                         max(vmem_needed + (4 << 20),
                                             32 << 20))),
            ),
        )(ids_flat, emb_table, pe)
        return out[:, :S, :]

    # ---- fallback: blocked manual-DMA row gather from HBM ----------------
    grid_spec = pltpu.PrefetchScalarGridSpec(
        num_scalar_prefetch=1,
        grid=(B, s_pad // ts),
        in_specs=[
            pl.BlockSpec(memory_space=pl.ANY),                  # table in HBM
            pl.BlockSpec((ts, D), lambda b, s, ids: (s, 0)),    # PE tile
        ],
        out_specs=pl.BlockSpec((1, ts, D), lambda b, s, ids: (b, s, 0)),
        scratch_shapes=[
            pltpu.VMEM((ts, D), jnp.float32),        # gather buffer
            pltpu.SemaphoreType.DMA((ts,)),          # one sem per row DMA
        ],
    )
    out = pl.pallas_call(
        functools.partial(_embed_dma_gather_kernel,
                          seq_pad=s_pad, block_seq=ts),
        out_shape=jax.ShapeDtypeStruct((B, s_pad, D), jnp.float32),
        grid_spec=grid_spec,
        compiler_params=pltpu.CompilerParams(
            dimension_semantics=("arbitrary", "arbitrary")),
    )(ids_flat, emb_table, pe)
    return out[:, :S, :]


def _reference_forward(token_ids, emb_table):
    """Pure-numpy replica of the PyTorch forward (float64 PE, same quirks)."""
    token_ids = np.asarray(token_ids)
    emb_table = np.asarray(emb_table, dtype=np.float64)
    B, S = token_ids.shape
    V, D = emb_table.shape
    emb = emb_table[token_ids]                                   # [B, S, D]
    pos = np.arange(S, dtype=np.float64)[:, None]                # [S, 1]
    hid = np.arange(D)[None, :]                                  # [1, D]
    angle = pos / np.power(10000.0, 2 * (hid // 2) / D)          # [S, D]
    pe = angle.copy()
    pe[0::2, :] = np.sin(angle[0::2, :])   # even sequence positions
    pe[1::2, :] = np.cos(angle[1::2, :])   # odd sequence positions
    return emb + pe[None, :, :]


if __name__ == "__main__":
    VOCAB, D = 64, 128
    key = jax.random.PRNGKey(0)
    k_emb, k_ids1, k_ids2 = jax.random.split(key, 3)

    # nn.Embedding init: N(0, 1) with padding_idx=0 row zeroed.
    emb_table = jax.random.normal(k_emb, (VOCAB, D), dtype=jnp.float32)
    emb_table = emb_table.at[0].set(0.0)

    # 1) Fast path: table resident in VMEM, aligned sequence length.
    B, S = 2, 8
    token_ids = jax.random.randint(k_ids1, (B, S), 0, VOCAB, dtype=jnp.int32)
    out = jax.block_until_ready(embedding_forward(token_ids, emb_table))
    ref = _reference_forward(token_ids, emb_table)
    np.testing.assert_allclose(np.asarray(out), ref, rtol=1e-4, atol=1e-4)
    assert out.shape == (B, S, D)

    # 2) Fallback path (forced): manual HBM row-DMA gather, un-aligned
    #    sequence length (exercises padding + trimming too).
    B2, S2 = 2, 12
    token_ids2 = jax.random.randint(k_ids2, (B2, S2), 0, VOCAB,
                                    dtype=jnp.int32)
    out2 = jax.block_until_ready(
        embedding_forward(token_ids2, emb_table, force_gather=True))
    ref2 = _reference_forward(token_ids2, emb_table)
    np.testing.assert_allclose(np.asarray(out2), ref2, rtol=1e-4, atol=1e-4)
    assert out2.shape == (B2, S2, D)

    print("KERNEL_OK")
</pallas_src>

<mosaic_0001>
module attributes {stable_mosaic.version = 11 : i64} {
  func.func @_embed_resident_kernel(%arg0: i32, %arg1: i32, %arg2: memref<16xi32, #tpu.memory_space<smem>>, %arg3: memref<64x128xf32, #tpu.memory_space<vmem>>, %arg4: memref<8x128xf32, #tpu.memory_space<vmem>>, %arg5: memref<1x8x128xf32, #tpu.memory_space<vmem>>) attributes {dimension_semantics = [#tpu.dimension_semantics<parallel>, #tpu.dimension_semantics<parallel>], iteration_bounds = array<i64: 2, 1>, scalar_prefetch = 1 : i64, scratch_operands = 0 : i64, tpu.core_type = #tpu.core_type<tc>, window_params = [{pipeline_mode = #tpu.pipeline_mode<synchronous>, transform_indices = @transform_0, window_bounds = array<i64: 64, 128>}, {transform_indices = @transform_1, window_bounds = array<i64: 8, 128>}, {transform_indices = @transform_2, window_bounds = array<i64: 1, 8, 128>}]} {
    %c8_i32 = arith.constant 8 : i32
    %0 = arith.muli %arg0, %c8_i32 : i32
    %c8_i32_0 = arith.constant 8 : i32
    %1 = arith.muli %arg1, %c8_i32_0 : i32
    %2 = arith.addi %0, %1 : i32
    %c0_i32 = arith.constant 0 : i32
    %3 = arith.addi %2, %c0_i32 : i32
    %4 = arith.index_cast %3 : i32 to index
    %5 = memref.load %arg2[%4] : memref<16xi32, #tpu.memory_space<smem>>
    %6 = arith.index_cast %5 : i32 to index
    %c0 = arith.constant 0 : index
    %7 = vector.load %arg3[%6, %c0] : memref<64x128xf32, #tpu.memory_space<vmem>>, vector<1x128xf32>
    %c0_1 = arith.constant 0 : index
    %c0_2 = arith.constant 0 : index
    %8 = vector.load %arg4[%c0_1, %c0_2] : memref<8x128xf32, #tpu.memory_space<vmem>>, vector<1x128xf32>
    %9 = arith.addf %7, %8 : vector<1x128xf32>
    %c0_3 = arith.constant 0 : index
    %c0_4 = arith.constant 0 : index
    %c0_5 = arith.constant 0 : index
    %10 = vector.load %arg5[%c0_3, %c0_4, %c0_5] : memref<1x8x128xf32, #tpu.memory_space<vmem>>, vector<1x1x128xf32>
    %11 = vector.shape_cast %10 : vector<1x1x128xf32> to vector<1x128xf32>
    %12 = vector.shape_cast %9 : vector<1x128xf32> to vector<1x1x128xf32>
    tpu.vector_store %arg5[%c0_3, %c0_4, %c0_5], %12 {strides = array<i32>} : memref<1x8x128xf32, #tpu.memory_space<vmem>>, vector<1x1x128xf32>,
    %c1_i32 = arith.constant 1 : i32
    %13 = arith.addi %2, %c1_i32 : i32
    %14 = arith.index_cast %13 : i32 to index
    %15 = memref.load %arg2[%14] : memref<16xi32, #tpu.memory_space<smem>>
    %16 = arith.index_cast %15 : i32 to index
    %c0_6 = arith.constant 0 : index
    %17 = vector.load %arg3[%16, %c0_6] : memref<64x128xf32, #tpu.memory_space<vmem>>, vector<1x128xf32>
    %c1 = arith.constant 1 : index
    %c0_7 = arith.constant 0 : index
    %18 = vector.load %arg4[%c1, %c0_7] : memref<8x128xf32, #tpu.memory_space<vmem>>, vector<1x128xf32>
    %19 = arith.addf %17, %18 : vector<1x128xf32>
    %c0_8 = arith.constant 0 : index
    %c1_9 = arith.constant 1 : index
    %c0_10 = arith.constant 0 : index
    %20 = vector.load %arg5[%c0_8, %c1_9, %c0_10] : memref<1x8x128xf32, #tpu.memory_space<vmem>>, vector<1x1x128xf32>
    %21 = vector.shape_cast %20 : vector<1x1x128xf32> to vector<1x128xf32>
    %22 = vector.shape_cast %19 : vector<1x128xf32> to vector<1x1x128xf32>
    tpu.vector_store %arg5[%c0_8, %c1_9, %c0_10], %22 {strides = array<i32>} : memref<1x8x128xf32, #tpu.memory_space<vmem>>, vector<1x1x128xf32>,
    %c2_i32 = arith.constant 2 : i32
    %23 = arith.addi %2, %c2_i32 : i32
    %24 = arith.index_cast %23 : i32 to index
    %25 = memref.load %arg2[%24] : memref<16xi32, #tpu.memory_space<smem>>
    %26 = arith.index_cast %25 : i32 to index
    %c0_11 = arith.constant 0 : index
    %27 = vector.load %arg3[%26, %c0_11] : memref<64x128xf32, #tpu.memory_space<vmem>>, vector<1x128xf32>
    %c2 = arith.constant 2 : index
    %c0_12 = arith.constant 0 : index
    %28 = vector.load %arg4[%c2, %c0_12] : memref<8x128xf32, #tpu.memory_space<vmem>>, vector<1x128xf32>
    %29 = arith.addf %27, %28 : vector<1x128xf32>
    %c0_13 = arith.constant 0 : index
    %c2_14 = arith.constant 2 : index
    %c0_15 = arith.constant 0 : index
    %30 = vector.load %arg5[%c0_13, %c2_14, %c0_15] : memref<1x8x128xf32, #tpu.memory_space<vmem>>, vector<1x1x128xf32>
    %31 = vector.shape_cast %30 : vector<1x1x128xf32> to vector<1x128xf32>
    %32 = vector.shape_cast %29 : vector<1x128xf32> to vector<1x1x128xf32>
    tpu.vector_store %arg5[%c0_13, %c2_14, %c0_15], %32 {strides = array<i32>} : memref<1x8x128xf32, #tpu.memory_space<vmem>>, vector<1x1x128xf32>,
    %c3_i32 = arith.constant 3 : i32
    %33 = arith.addi %2, %c3_i32 : i32
    %34 = arith.index_cast %33 : i32 to index
    %35 = memref.load %arg2[%34] : memref<16xi32, #tpu.memory_space<smem>>
    %36 = arith.index_cast %35 : i32 to index
    %c0_16 = arith.constant 0 : index
    %37 = vector.load %arg3[%36, %c0_16] : memref<64x128xf32, #tpu.memory_space<vmem>>, vector<1x128xf32>
    %c3 = arith.constant 3 : index
    %c0_17 = arith.constant 0 : index
    %38 = vector.load %arg4[%c3, %c0_17] : memref<8x128xf32, #tpu.memory_space<vmem>>, vector<1x128xf32>
    %39 = arith.addf %37, %38 : vector<1x128xf32>
    %c0_18 = arith.constant 0 : index
    %c3_19 = arith.constant 3 : index
    %c0_20 = arith.constant 0 : index
    %40 = vector.load %arg5[%c0_18, %c3_19, %c0_20] : memref<1x8x128xf32, #tpu.memory_space<vmem>>, vector<1x1x128xf32>
    %41 = vector.shape_cast %40 : vector<1x1x128xf32> to vector<1x128xf32>
    %42 = vector.shape_cast %39 : vector<1x128xf32> to vector<1x1x128xf32>
    tpu.vector_store %arg5[%c0_18, %c3_19, %c0_20], %42 {strides = array<i32>} : memref<1x8x128xf32, #tpu.memory_space<vmem>>, vector<1x1x128xf32>,
    %c4_i32 = arith.constant 4 : i32
    %43 = arith.addi %2, %c4_i32 : i32
    %44 = arith.index_cast %43 : i32 to index
    %45 = memref.load %arg2[%44] : memref<16xi32, #tpu.memory_space<smem>>
    %46 = arith.index_cast %45 : i32 to index
    %c0_21 = arith.constant 0 : index
    %47 = vector.load %arg3[%46, %c0_21] : memref<64x128xf32, #tpu.memory_space<vmem>>, vector<1x128xf32>
    %c4 = arith.constant 4 : index
    %c0_22 = arith.constant 0 : index
    %48 = vector.load %arg4[%c4, %c0_22] : memref<8x128xf32, #tpu.memory_space<vmem>>, vector<1x128xf32>
    %49 = arith.addf %47, %48 : vector<1x128xf32>
    %c0_23 = arith.constant 0 : index
    %c4_24 = arith.constant 4 : index
    %c0_25 = arith.constant 0 : index
    %50 = vector.load %arg5[%c0_23, %c4_24, %c0_25] : memref<1x8x128xf32, #tpu.memory_space<vmem>>, vector<1x1x128xf32>
    %51 = vector.shape_cast %50 : vector<1x1x128xf32> to vector<1x128xf32>
    %52 = vector.shape_cast %49 : vector<1x128xf32> to vector<1x1x128xf32>
    tpu.vector_store %arg5[%c0_23, %c4_24, %c0_25], %52 {strides = array<i32>} : memref<1x8x128xf32, #tpu.memory_space<vmem>>, vector<1x1x128xf32>,
    %c5_i32 = arith.constant 5 : i32
    %53 = arith.addi %2, %c5_i32 : i32
    %54 = arith.index_cast %53 : i32 to index
    %55 = memref.load %arg2[%54] : memref<16xi32, #tpu.memory_space<smem>>
    %56 = arith.index_cast %55 : i32 to index
    %c0_26 = arith.constant 0 : index
    %57 = vector.load %arg3[%56, %c0_26] : memref<64x128xf32, #tpu.memory_space<vmem>>, vector<1x128xf32>
    %c5 = arith.constant 5 : index
    %c0_27 = arith.constant 0 : index
    %58 = vector.load %arg4[%c5, %c0_27] : memref<8x128xf32, #tpu.memory_space<vmem>>, vector<1x128xf32>
    %59 = arith.addf %57, %58 : vector<1x128xf32>
    %c0_28 = arith.constant 0 : index
    %c5_29 = arith.constant 5 : index
    %c0_30 = arith.constant 0 : index
    %60 = vector.load %arg5[%c0_28, %c5_29, %c0_30] : memref<1x8x128xf32, #tpu.memory_space<vmem>>, vector<1x1x128xf32>
    %61 = vector.shape_cast %60 : vector<1x1x128xf32> to vector<1x128xf32>
    %62 = vector.shape_cast %59 : vector<1x128xf32> to vector<1x1x128xf32>
    tpu.vector_store %arg5[%c0_28, %c5_29, %c0_30], %62 {strides = array<i32>} : memref<1x8x128xf32, #tpu.memory_space<vmem>>, vector<1x1x128xf32>,
    %c6_i32 = arith.constant 6 : i32
    %63 = arith.addi %2, %c6_i32 : i32
    %64 = arith.index_cast %63 : i32 to index
    %65 = memref.load %arg2[%64] : memref<16xi32, #tpu.memory_space<smem>>
    %66 = arith.index_cast %65 : i32 to index
    %c0_31 = arith.constant 0 : index
    %67 = vector.load %arg3[%66, %c0_31] : memref<64x128xf32, #tpu.memory_space<vmem>>, vector<1x128xf32>
    %c6 = arith.constant 6 : index
    %c0_32 = arith.constant 0 : index
    %68 = vector.load %arg4[%c6, %c0_32] : memref<8x128xf32, #tpu.memory_space<vmem>>, vector<1x128xf32>
    %69 = arith.addf %67, %68 : vector<1x128xf32>
    %c0_33 = arith.constant 0 : index
    %c6_34 = arith.constant 6 : index
    %c0_35 = arith.constant 0 : index
    %70 = vector.load %arg5[%c0_33, %c6_34, %c0_35] : memref<1x8x128xf32, #tpu.memory_space<vmem>>, vector<1x1x128xf32>
    %71 = vector.shape_cast %70 : vector<1x1x128xf32> to vector<1x128xf32>
    %72 = vector.shape_cast %69 : vector<1x128xf32> to vector<1x1x128xf32>
    tpu.vector_store %arg5[%c0_33, %c6_34, %c0_35], %72 {strides = array<i32>} : memref<1x8x128xf32, #tpu.memory_space<vmem>>, vector<1x1x128xf32>,
    %c7_i32 = arith.constant 7 : i32
    %73 = arith.addi %2, %c7_i32 : i32
    %74 = arith.index_cast %73 : i32 to index
    %75 = memref.load %arg2[%74] : memref<16xi32, #tpu.memory_space<smem>>
    %76 = arith.index_cast %75 : i32 to index
    %c0_36 = arith.constant 0 : index
    %77 = vector.load %arg3[%76, %c0_36] : memref<64x128xf32, #tpu.memory_space<vmem>>, vector<1x128xf32>
    %c7 = arith.constant 7 : index
    %c0_37 = arith.constant 0 : index
    %78 = vector.load %arg4[%c7, %c0_37] : memref<8x128xf32, #tpu.memory_space<vmem>>, vector<1x128xf32>
    %79 = arith.addf %77, %78 : vector<1x128xf32>
    %c0_38 = arith.constant 0 : index
    %c7_39 = arith.constant 7 : index
    %c0_40 = arith.constant 0 : index
    %80 = vector.load %arg5[%c0_38, %c7_39, %c0_40] : memref<1x8x128xf32, #tpu.memory_space<vmem>>, vector<1x1x128xf32>
    %81 = vector.shape_cast %80 : vector<1x1x128xf32> to vector<1x128xf32>
    %82 = vector.shape_cast %79 : vector<1x128xf32> to vector<1x1x128xf32>
    tpu.vector_store %arg5[%c0_38, %c7_39, %c0_40], %82 {strides = array<i32>} : memref<1x8x128xf32, #tpu.memory_space<vmem>>, vector<1x1x128xf32>,
    return
  }
  func.func @transform_0(%arg0: i32, %arg1: i32, %arg2: memref<16xi32, #tpu.memory_space<smem>>) -> (i32, i32) {
    %c0_i32 = arith.constant 0 : i32
    %c0_i32_0 = arith.constant 0 : i32
    %c0_i32_1 = arith.constant 0 : i32
    return %c0_i32, %c0_i32_0 : i32, i32
  }
  func.func @transform_1(%arg0: i32, %arg1: i32, %arg2: memref<16xi32, #tpu.memory_space<smem>>) -> (i32, i32) {
    %c0_i32 = arith.constant 0 : i32
    %c0_i32_0 = arith.constant 0 : i32
    return %arg1, %c0_i32 : i32, i32
  }
  func.func @transform_2(%arg0: i32, %arg1: i32, %arg2: memref<16xi32, #tpu.memory_space<smem>>) -> (i32, i32, i32) {
    %c0_i32 = arith.constant 0 : i32
    %c0_i32_0 = arith.constant 0 : i32
    return %arg0, %arg1, %c0_i32 : i32, i32, i32
  }
}

</mosaic_0001>

<llo_original>
// kernel: tpu_custom_call.1
$region0: #{tpu_custom_call.1}
  #allocation0 [shape = 'u32[]', space=smem, size = 0x4, offset = 0x4, fixed_abs, tag = 'smem constant byte address 0x4 - core index']
  #allocation1 [shape = 'u32[144,128]{1,0:T(1,128)}', space=vmem, size = 0x12000, scoped, tag = 'internal scratch']
  #allocation2 [shape = 's32[1]{0}', space=sflag, size = 0x4, scoped, tag = 'scoped memory for tpu_custom_call.1']
  #allocation3 [shape = 'u8[512]{0}', space=smem, size = 0x200, scoped, tag = 'prefetched SMEM operand 0']
  %s0 = inlined_call_operand.hbm [shape: s32[16], index: 0, kind: input, shape index: {}]
  %s1 = inlined_call_operand.hbm [shape: f32[64,128], index: 1, kind: input, shape index: {}]
  %s2 = inlined_call_operand.hbm [shape: f32[8,128], index: 2, kind: input, shape index: {}]
  %s3 = inlined_call_operand.hbm [shape: f32[2,8,128], index: 3, kind: output, shape index: {}]
  %s4 = sld [smem:[#allocation0]]
  $region49: #{tpu_custom_call.1} parent=0
    _
  %s6 = ssub.s32 1, %s4
  %s7 = scalar_select 0, %s6, %s4
  %9 = dma.hbm_to_smem %s0, 16, [#allocation3], [#allocation2]
  %10 = dma.done [#allocation2], 16
  %11 = sfence
  $region1: #{tpu_custom_call.1} parent=0
    #allocation4 [shape = 'u8[32768]{0}', space=vmem, size = 0x8000, scoped, tag = 'input window, operand 1, single buffered']
    #allocation5 [shape = 's32[2]{0}', space=sflag, size = 0x8, scoped, tag = 'scoped memory for tpu_custom_call.1']
    #allocation6 [shape = 's32[2]{0}', space=sflag, size = 0x8, scoped, tag = 'scoped memory for tpu_custom_call.1']
    #allocation7 [shape = 'u8[4096]{0}', space=vmem, size = 0x1000, scoped, tag = 'input window, operand 2, single buffered']
    #allocation8 [shape = 's32[1]{0}', space=sflag, size = 0x4, scoped, tag = 'scoped memory for tpu_custom_call.1']
    #allocation9 [shape = 'u8[8192]{0}', space=vmem, size = 0x2000, scoped, tag = 'output window, operand 0']
    %12 = vsyncpa [#allocation5], 0
    %13 = vsyncpa [#allocation8], 0
    %14 = vsyncpa [#allocation6], 0
    %s15 = scalar_lea.sflag [#allocation6], 1
    %16 = vsyncpa %s15, 0
    loop: start=0, step=1, limit=4
    $region2: #{tpu_custom_call.1} parent=1 // loop_pre_header
      _
    $region3: #{tpu_custom_call.1} parent=1 // loop_header
      %s18 = sphi 0, %s22
      %p19 = scmp.ge.s32.totalorder %s18, 4
      %s25 = sphi 0, %s37
      %s26 = sphi 0, %s33
      %s27 = sphi 0, %s25
      %s28 = sphi 0, %s26
      %s29 = sphi 0, %s27
      %s30 = sphi 0, %s28
      %s38 = sphi 0, %s38
      %s40 = sphi 0, %s38
      %s41 = sphi 0, %s40
      %s55 = sphi 0, %s41
      %s61 = sphi 0, %s63
      %s64 = sphi 0, %s61
      %s65 = sphi 0, %s64
      %s81 = sphi 0, %s65
      %s89 = sphi 0, %s91
      %s92 = sphi 0, %s89
      %s93 = sphi 0, %s92
      %s109 = sphi 0, %s93
    $region4: #{tpu_custom_call.1} parent=1 // loop_header_branch
      %21 = sbr.rel (%p19) target = $region8
    $region5: #{tpu_custom_call.1} parent=1 // loop_body
      %s23 = ssub.s32 %s18, 1
      %s24 = ssub.s32 %s18, 2
      %s31 = sadd.s32 1, %s26
      %p32 = scmp.ge.s32.totalorder %s31, 1
      %s33 = scalar_select %p32, 0, %s31
      %s34 = sadd.s32 1, %s25
      %s35 = scalar_select %p32, %s34, %s25
      %p36 = scmp.ge.s32.totalorder %s35, 2
      %s37 = scalar_select %p36, 0, %s35
      %s39 = sadd.s32 %s38, 1
      %p42 = scmp.eq.s32.totalorder %s18, 1
      %p43 = scmp.ne.s32.totalorder %s38, %s40
      %p44 = scmp.eq.s32.totalorder %s18, 0
      %p45 = por %p43, %p44
      %p46 = scmp.ne.s32.totalorder %s38, %s40
      %p47 = scmp.eq.s32.totalorder %s23, 1
      %p48 = por %p46, %p47
      %p49 = scmp.ne.s32.totalorder %s40, %s41
      %p50 = scmp.eq.s32.totalorder %s23, 0
      %p51 = por %p49, %p50
      %p52 = scmp.ne.s32.totalorder %s40, %s41
      %p53 = scmp.eq.s32.totalorder %s24, 1
      %p54 = por %p52, %p53
      %p56 = scmp.ne.s32.totalorder %s41, %s55
      %p57 = scmp.eq.s32.totalorder %s24, 0
      %p58 = por %p56, %p57
      %s59 = ssub.s32 %s26, %s33
      %p60 = scmp.eq.s32.totalorder %s59, 0
      %s62 = sadd.s32 %s61, 1
      %s63 = scalar_select %p60, %s61, %s62
      %p66 = pneg %p60
      %p67 = scmp.eq.s32.totalorder %s18, 1
      %p68 = por %p66, %p67
      %p69 = scmp.ne.s32.totalorder %s61, %s64
      %p70 = scmp.eq.s32.totalorder %s18, 0
      %p71 = por %p69, %p70
      %p72 = scmp.ne.s32.totalorder %s61, %s64
      %p73 = scmp.eq.s32.totalorder %s23, 1
      %p74 = por %p72, %p73
      %p75 = scmp.ne.s32.totalorder %s64, %s65
      %p76 = scmp.eq.s32.totalorder %s23, 0
      %p77 = por %p75, %p76
      %p78 = scmp.ne.s32.totalorder %s64, %s65
      %p79 = scmp.eq.s32.totalorder %s24, 1
      %p80 = por %p78, %p79
      %p82 = scmp.ne.s32.totalorder %s65, %s81
      %p83 = scmp.eq.s32.totalorder %s24, 0
      %p84 = por %p82, %p83
      %s85 = ssub.s32 %s25, %s37
      %s86 = ssub.s32 %s26, %s33
      %s87 = sor.u32 %s85, %s86
      %p88 = scmp.eq.s32.totalorder %s87, 0
      %s90 = sadd.s32 %s89, 1
      %s91 = scalar_select %p88, %s89, %s90
      %p94 = pneg %p88
      %p95 = scmp.eq.s32.totalorder %s18, 1
      %p96 = por %p94, %p95
      %p97 = scmp.ne.s32.totalorder %s89, %s92
      %p98 = scmp.eq.s32.totalorder %s18, 0
      %p99 = por %p97, %p98
      %p100 = scmp.ne.s32.totalorder %s89, %s92
      %p101 = scmp.eq.s32.totalorder %s23, 1
      %p102 = por %p100, %p101
      %p103 = scmp.ne.s32.totalorder %s92, %s93
      %p104 = scmp.eq.s32.totalorder %s23, 0
      %p105 = por %p103, %p104
      %p106 = scmp.ne.s32.totalorder %s92, %s93
      %p107 = scmp.eq.s32.totalorder %s24, 1
      %p108 = por %p106, %p107
      %p110 = scmp.ne.s32.totalorder %s93, %s109
      %p111 = scmp.eq.s32.totalorder %s24, 0
      %p112 = por %p110, %p111
      %p113 = scmp.le.s32.totalorder 1, %s18
      %p114 = scmp.lt.s32.totalorder %s18, 3
      %p115 = pnand %p113, %p114
      %p116 = pneg %p115
      // Predicated region
      $region9: #{tpu_custom_call.1} parent=5 // pred_check
        _
      $region10: #{tpu_custom_call.1} parent=5 // pred_check_branch
        %118 = sbr.rel (%p115) target = $region12
      $region11: #{tpu_custom_call.1} parent=5 // pred_region
        %s119 = ssub.s32 %s18, 1
        // Predicated region
        $region13: #{tpu_custom_call.1} parent=11 // pred_check
          %p120 = pneg %p51
        $region14: #{tpu_custom_call.1} parent=11 // pred_check_branch
          %122 = sbr.rel (%p120) target = $region16
        $region15: #{tpu_custom_call.1} parent=11 // pred_region
          %s124 = ssub.s32 1024, 1024
          %125 = vsyncadd [#allocation5], %s124
          %s126 = sshll.u32 [#allocation4], 4
          %s127 = int_to_ptr.vmem [resolvable:$true] %s126
          %132 = dma.hbm_to_vmem [thread:$0]  %s1, 1024, %s127, [#allocation5], 128, 128, 8
        $region16: #{tpu_custom_call.1} parent=11 // pred_fallthru
          _
        // Predicated region
        $region17: #{tpu_custom_call.1} parent=11 // pred_check
          %p133 = pneg %p77
        $region18: #{tpu_custom_call.1} parent=11 // pred_check_branch
          %135 = sbr.rel (%p133) target = $region20
        $region19: #{tpu_custom_call.1} parent=11 // pred_region
          %s137 = ssub.s32 128, 128
          %138 = vsyncadd [#allocation8], %s137
          %s139 = smul.addr %s28, 128
          %s140 = scalar_lea.hbm %s2, %s139
          %s142 = sshll.u32 [#allocation7], 4
          %s143 = int_to_ptr.vmem [resolvable:$true] %s142
          %145 = dma.hbm_to_vmem [thread:$0]  %s140, 128, %s143, [#allocation8]
        $region20: #{tpu_custom_call.1} parent=11 // pred_fallthru
          _
      $region12: #{tpu_custom_call.1} parent=5 // pred_fallthru
        _
      %p146 = scmp.lt.s32.totalorder %s18, 2
      // Predicated region
      $region21: #{tpu_custom_call.1} parent=5 // pred_check
        %p147 = pneg %p146
      $region22: #{tpu_custom_call.1} parent=5 // pred_check_branch
        %149 = sbr.rel (%p147) target = $region24
      $region23: #{tpu_custom_call.1} parent=5 // pred_region
        _
      $region24: #{tpu_custom_call.1} parent=5 // pred_fallthru
        _
      %p150 = scmp.le.s32.totalorder 1, %s18
      %p151 = scmp.lt.s32.totalorder %s18, 3
      %p152 = pnand %p150, %p151
      %p153 = pneg %p152
      // Predicated region
      $region25: #{tpu_custom_call.1} parent=5 // pred_check
        _
      $region26: #{tpu_custom_call.1} parent=5 // pred_check_branch
        %155 = sbr.rel (%p152) target = $region28
      $region27: #{tpu_custom_call.1} parent=5 // pred_region
        %s156 = ssub.s32 %s18, 1
        // Predicated region
        $region29: #{tpu_custom_call.1} parent=27 // pred_check
          %p157 = pneg %p51
        $region30: #{tpu_custom_call.1} parent=27 // pred_check_branch
          %159 = sbr.rel (%p157) target = $region32
        $region31: #{tpu_custom_call.1} parent=27 // pred_region
          %160 = dma.done [#allocation5], 1024
        $region32: #{tpu_custom_call.1} parent=27 // pred_fallthru
          _
        // Predicated region
        $region33: #{tpu_custom_call.1} parent=27 // pred_check
          %p161 = pneg %p77
        $region34: #{tpu_custom_call.1} parent=27 // pred_check_branch
          %163 = sbr.rel (%p161) target = $region36
        $region35: #{tpu_custom_call.1} parent=27 // pred_region
          %164 = dma.done [#allocation8], 128
        $region36: #{tpu_custom_call.1} parent=27 // pred_fallthru
          _
        %p165 = pneg %p51
        %p166 = pneg %p48
        %p167 = pneg %p77
        %p168 = pneg %p74
        %p169 = pneg %p105
        %p170 = pneg %p102
        %s171 = sand.u32 %s92, 1
        %s172 = scalar_lea.sflag [#allocation6], %s171
        %s173 = sand.u32 %s92, 1
        %s174 = smul.addr %s173, 8
        %s175 = scalar_lea.vmem [#allocation9], %s174
        %s176 = smul.u32 %s27, 8
        %s177 = smul.u32 %s28, 8
        %s178 = sadd.s32 %s176, %s177
        %s179 = sld [smem:[#allocation3 + %s178]]
        %s180 = scalar_lea.vmem [#allocation4], %s179
        %v181 = vld [vmem:[%s180] sm:$0x1]
        %v182 = vld [vmem:[#allocation7] sm:$0x1]
        %v183 = vadd.f32 %v181, %v182
        %184 = vst [vmem:[%s175] sm:$0x1] %v183
        %s185 = sadd.s32 %s178, 1
        %s186 = sld [smem:[#allocation3 + %s185]]
        %s187 = scalar_lea.vmem [#allocation4], %s186
        %v188 = vld [vmem:[%s187] sm:$0x1]
        %v189 = vld [vmem:[#allocation7 + $0x1] sm:$0x1]
        %v190 = vadd.f32 %v188, %v189
        %191 = vst [vmem:[%s175 + $0x1] sm:$0x1] %v190
        %s192 = sadd.s32 %s178, 2
        %s193 = sld [smem:[#allocation3 + %s192]]
        %s194 = scalar_lea.vmem [#allocation4], %s193
        %v195 = vld [vmem:[%s194] sm:$0x1]
        %v196 = vld [vmem:[#allocation7 + $0x2] sm:$0x1]
        %v197 = vadd.f32 %v195, %v196
        %198 = vst [vmem:[%s175 + $0x2] sm:$0x1] %v197
        %s199 = sadd.s32 %s178, 3
        %s200 = sld [smem:[#allocation3 + %s199]]
        %s201 = scalar_lea.vmem [#allocation4], %s200
        %v202 = vld [vmem:[%s201] sm:$0x1]
        %v203 = vld [vmem:[#allocation7 + $0x3] sm:$0x1]
        %v204 = vadd.f32 %v202, %v203
        %205 = vst [vmem:[%s175 + $0x3] sm:$0x1] %v204
        %s206 = sadd.s32 %s178, 4
        %s207 = sld [smem:[#allocation3 + %s206]]
        %s208 = scalar_lea.vmem [#allocation4], %s207
        %v209 = vld [vmem:[%s208] sm:$0x1]
        %v210 = vld [vmem:[#allocation7 + $0x4] sm:$0x1]
        %v211 = vadd.f32 %v209, %v210
        %212 = vst [vmem:[%s175 + $0x4] sm:$0x1] %v211
        %s213 = sadd.s32 %s178, 5
        %s214 = sld [smem:[#allocation3 + %s213]]
        %s215 = scalar_lea.vmem [#allocation4], %s214
        %v216 = vld [vmem:[%s215] sm:$0x1]
        %v217 = vld [vmem:[#allocation7 + $0x5] sm:$0x1]
        %v218 = vadd.f32 %v216, %v217
        %219 = vst [vmem:[%s175 + $0x5] sm:$0x1] %v218
        %s220 = sadd.s32 %s178, 6
        %s221 = sld [smem:[#allocation3 + %s220]]
        %s222 = scalar_lea.vmem [#allocation4], %s221
        %v223 = vld [vmem:[%s222] sm:$0x1]
        %v224 = vld [vmem:[#allocation7 + $0x6] sm:$0x1]
        %v225 = vadd.f32 %v223, %v224
        %226 = vst [vmem:[%s175 + $0x6] sm:$0x1] %v225
        %s227 = sadd.s32 %s178, 7
        %s228 = sld [smem:[#allocation3 + %s227]]
        %s229 = scalar_lea.vmem [#allocation4], %s228
        %v230 = vld [vmem:[%s229] sm:$0x1]
        %v231 = vld [vmem:[#allocation7 + $0x7] sm:$0x1]
        %v232 = vadd.f32 %v230, %v231
        %233 = vst [vmem:[%s175 + $0x7] sm:$0x1] %v232
        %s234 = sand.u32 %s92, 1
        %s235 = scalar_lea.sflag [#allocation6], %s234
        %s236 = sand.u32 %s92, 1
        %s237 = smul.addr %s236, 8
        %s238 = scalar_lea.vmem [#allocation9], %s237
        // Predicated region
        $region37: #{tpu_custom_call.1} parent=27 // pred_check
          %p239 = pneg %p102
        $region38: #{tpu_custom_call.1} parent=27 // pred_check_branch
          %241 = sbr.rel (%p239) target = $region40
        $region39: #{tpu_custom_call.1} parent=27 // pred_region
          %s243 = ssub.s32 128, 128
          %244 = vsyncadd %s235, %s243
          %s245 = sadd.s32 %s28, %s27
          %s246 = smul.addr %s245, 128
          %s247 = scalar_lea.hbm %s3, %s246
          %s249 = sshll.u32 %s238, 4
          %s250 = int_to_ptr.vmem [resolvable:$true] %s249
          %252 = dma.vmem_to_hbm [thread:$0]  %s250, 128, %s247, %s235
        $region40: #{tpu_custom_call.1} parent=27 // pred_fallthru
          _
      $region28: #{tpu_custom_call.1} parent=5 // pred_fallthru
        _
      %p253 = scmp.le.s32.totalorder 2, %s18
      // Predicated region
      $region41: #{tpu_custom_call.1} parent=5 // pred_check
        %p254 = pneg %p253
      $region42: #{tpu_custom_call.1} parent=5 // pred_check_branch
        %256 = sbr.rel (%p254) target = $region44
      $region43: #{tpu_custom_call.1} parent=5 // pred_region
        %s257 = ssub.s32 %s18, 2
        // Predicated region
        $region45: #{tpu_custom_call.1} parent=43 // pred_check
          %p258 = pneg %p108
        $region46: #{tpu_custom_call.1} parent=43 // pred_check_branch
          %260 = sbr.rel (%p258) target = $region48
        $region47: #{tpu_custom_call.1} parent=43 // pred_region
          %s261 = sand.u32 %s93, 1
          %s262 = scalar_lea.sflag [#allocation6], %s261
          %s263 = sand.u32 %s93, 1
          %s264 = smul.addr %s263, 8
          %s265 = scalar_lea.vmem [#allocation9], %s264
          %266 = dma.done %s262, 128
        $region48: #{tpu_custom_call.1} parent=43 // pred_fallthru
          _
      $region44: #{tpu_custom_call.1} parent=5 // pred_fallthru
        _
    $region6: #{tpu_custom_call.1} parent=1 // loop_footer
      %s22 = sadd.s32 1, %s18
    $region7: #{tpu_custom_call.1} parent=1 // loop_footer_branch
      %17 = sbr.rel target = $region3
    $region8: #{tpu_custom_call.1} parent=1 // loop_exit
      _
    %267 = vsyncpa [#allocation5], 1
    %s268 = scalar_lea.sflag [#allocation5], 1
    %269 = vsyncpa %s268, 1
    %270 = vsyncpa [#allocation8], 1
    %271 = vsyncpa [#allocation6], 1
    %s272 = scalar_lea.sflag [#allocation6], 1
    %273 = vsyncpa %s272, 1

</llo_original>
